<compile_context>
chip_gen: v7x
topology: tpu7x:2x2x1
jax: 0.10.0
libtpu: 0.0.40
codegen_flags: <defaults>
</compile_context>

<pallas_src>
import functools

import jax
import jax.numpy as jnp
from jax import lax
from jax.experimental import pallas as pl
from jax.experimental.pallas import tpu as pltpu


def _round_up(x, m):
    return (x + m - 1) // m * m


def _patch_embed_ln_kernel(p_ref, w_ref, b_ref, g_ref, beta_ref, o_ref, acc_ref, *, eps):
    """One (tm, tk) patch tile x (tk, D) weight tile; fused bias + LayerNorm epilogue."""
    k = pl.program_id(1)

    @pl.when(k == 0)
    def _():
        acc_ref[...] = jnp.zeros_like(acc_ref)

    acc_ref[...] += jnp.dot(p_ref[...], w_ref[...], preferred_element_type=jnp.float32)

    @pl.when(k == pl.num_programs(1) - 1)
    def _():
        y = acc_ref[...] + b_ref[...]                      # (tm, D) + (1, D)
        mean = jnp.mean(y, axis=-1, keepdims=True)
        ctr = y - mean
        var = jnp.mean(ctr * ctr, axis=-1, keepdims=True)
        yn = ctr * lax.rsqrt(var + eps)
        o_ref[...] = (yn * g_ref[...] + beta_ref[...]).astype(o_ref.dtype)


def cube_embedding_forward(x, conv_w, conv_b, ln_gamma, ln_beta, patch_size,
                           *, eps=1e-5, tm=128):
    """
    x:        (B, in_chans, T, Lat, Lon)
    conv_w:   (embed_dim, in_chans, pT, pLat, pLon)
    conv_b, ln_gamma, ln_beta: (embed_dim,)
    returns:  (B, N, embed_dim) with N = (T//pT)*(Lat//pLat)*(Lon//pLon)
    """
    B, C, T, H, W = x.shape
    pT, pH, pW = patch_size
    D = conv_w.shape[0]
    nT, nH, nW = T // pT, H // pH, W // pW
    N = nT * nH * nW
    K = C * pT * pH * pW

    # ---- layout plumbing (plain JAX): stride==kernel Conv3d == patch extract + matmul ----
    patches = x.reshape(B, C, nT, pT, nH, pH, nW, pW)
    patches = patches.transpose(0, 2, 4, 6, 1, 3, 5, 7)      # (B, nT, nH, nW, C, pT, pH, pW)
    patches = patches.reshape(B * N, K)                       # K-order = (C, pT, pH, pW)
    w2d = conv_w.reshape(D, K).T.astype(x.dtype)              # (K, D), same K-order

    # ---- pad to TPU-friendly, lane-dense tiles ----
    M = B * N
    M_pad = _round_up(M, tm)
    K_pad = _round_up(K, 128)
    tk = K_pad if K_pad <= 1024 else 512                      # single K step when small
    K_pad = _round_up(K_pad, tk)

    if M_pad != M:
        patches = jnp.pad(patches, ((0, M_pad - M), (0, 0)))
    if K_pad != K:
        patches = jnp.pad(patches, ((0, 0), (0, K_pad - K)))
        w2d = jnp.pad(w2d, ((0, K_pad - K), (0, 0)))

    b2d = conv_b.reshape(1, D).astype(jnp.float32)
    g2d = ln_gamma.reshape(1, D).astype(jnp.float32)
    beta2d = ln_beta.reshape(1, D).astype(jnp.float32)

    grid = (M_pad // tm, K_pad // tk)

    out = pl.pallas_call(
        functools.partial(_patch_embed_ln_kernel, eps=eps),
        out_shape=jax.ShapeDtypeStruct((M_pad, D), x.dtype),
        grid_spec=pltpu.PrefetchScalarGridSpec(
            num_scalar_prefetch=0,
            grid=grid,
            in_specs=[
                pl.BlockSpec((tm, tk), lambda m, k: (m, k)),   # patch rows tile
                pl.BlockSpec((tk, D), lambda m, k: (k, 0)),    # weight K-slice
                pl.BlockSpec((1, D), lambda m, k: (0, 0)),     # conv bias (resident)
                pl.BlockSpec((1, D), lambda m, k: (0, 0)),     # LN gamma (resident)
                pl.BlockSpec((1, D), lambda m, k: (0, 0)),     # LN beta  (resident)
            ],
            out_specs=pl.BlockSpec((tm, D), lambda m, k: (m, 0)),
            scratch_shapes=[pltpu.VMEM((tm, D), jnp.float32)],
        ),
        compiler_params=pltpu.CompilerParams(
            dimension_semantics=("parallel", "arbitrary"),
        ),
    )(patches, w2d, b2d, g2d, beta2d)

    return out[:M].reshape(B, N, D)


if __name__ == "__main__":
    # Small config: img_size=(8,16,16), patch=(2,4,4), in_chans=4, embed_dim=128
    #   -> N = 4*4*4 = 64 tokens, K = 4*2*4*4 = 128, B*N = 128 rows (one (128,128) tile).
    img_size = (8, 16, 16)     # (T, Lat, Lon)
    patch_size = (2, 4, 4)
    in_chans = 4
    embed_dim = 128            # lane-dense (multiple of 128)
    B = 2

    key = jax.random.PRNGKey(0)
    kx, kw, kb = jax.random.split(key, 3)
    x = jax.random.normal(kx, (B, in_chans) + img_size, dtype=jnp.float32)
    conv_w = jax.random.normal(kw, (embed_dim, in_chans) + patch_size, dtype=jnp.float32) * 0.05
    conv_b = jax.random.normal(kb, (embed_dim,), dtype=jnp.float32) * 0.05
    ln_gamma = jnp.ones((embed_dim,), jnp.float32)   # nn.LayerNorm default init
    ln_beta = jnp.zeros((embed_dim,), jnp.float32)

    out = cube_embedding_forward(x, conv_w, conv_b, ln_gamma, ln_beta, patch_size)
    out = jax.block_until_ready(out)

    # ---- reference: true Conv3d (lax) + reshape/transpose + LayerNorm (plain JAX) ----
    conv = lax.conv_general_dilated(
        x, conv_w, window_strides=patch_size, padding="VALID",
        dimension_numbers=("NCDHW", "OIDHW", "NCDHW"))
    conv = conv + conv_b[None, :, None, None, None]
    ref = conv.reshape(B, embed_dim, -1).transpose(0, 2, 1)          # (B, N, D)
    mean = ref.mean(-1, keepdims=True)
    var = ((ref - mean) ** 2).mean(-1, keepdims=True)
    ref = (ref - mean) / jnp.sqrt(var + 1e-5)
    ref = ref * ln_gamma + ln_beta

    assert out.shape == ref.shape, (out.shape, ref.shape)
    max_err = float(jnp.max(jnp.abs(out - ref)))
    # DEFAULT MXU precision (bf16 operands, f32 accum) vs XLA reference -> loose-ish tol.
    assert jnp.allclose(out, ref, atol=1e-2, rtol=1e-2), f"mismatch vs reference, max_err={max_err}"

    print("KERNEL_OK")
</pallas_src>

<mosaic_0001>
module attributes {stable_mosaic.version = 11 : i64} {
  func.func @_patch_embed_ln_kernel(%arg0: i32, %arg1: i32, %arg2: memref<128x128xf32, #tpu.memory_space<vmem>>, %arg3: memref<128x128xf32, #tpu.memory_space<vmem>>, %arg4: memref<1x128xf32, #tpu.memory_space<vmem>>, %arg5: memref<1x128xf32, #tpu.memory_space<vmem>>, %arg6: memref<1x128xf32, #tpu.memory_space<vmem>>, %arg7: memref<128x128xf32, #tpu.memory_space<vmem>>, %arg8: memref<128x128xf32, #tpu.memory_space<vmem>>) attributes {dimension_semantics = [#tpu.dimension_semantics<parallel>, #tpu.dimension_semantics<arbitrary>], iteration_bounds = array<i64: 1, 1>, scalar_prefetch = 0 : i64, scratch_operands = 1 : i64, tpu.core_type = #tpu.core_type<tc>, window_params = [{transform_indices = @transform_0, window_bounds = array<i64: 128, 128>}, {transform_indices = @transform_1, window_bounds = array<i64: 128, 128>}, {pipeline_mode = #tpu.pipeline_mode<synchronous>, transform_indices = @transform_2, window_bounds = array<i64: 1, 128>}, {pipeline_mode = #tpu.pipeline_mode<synchronous>, transform_indices = @transform_3, window_bounds = array<i64: 1, 128>}, {pipeline_mode = #tpu.pipeline_mode<synchronous>, transform_indices = @transform_4, window_bounds = array<i64: 1, 128>}, {transform_indices = @transform_5, window_bounds = array<i64: 128, 128>}]} {
    %c0_i32 = arith.constant 0 : i32
    %0 = arith.cmpi eq, %arg1, %c0_i32 : i32
    %1 = arith.extui %0 : i1 to i32
    %c0_i32_0 = arith.constant 0 : i32
    %2 = arith.cmpi ne, %1, %c0_i32_0 : i32
    scf.if %2 {
      %cst_10 = arith.constant 0.000000e+00 : f32
      %12 = vector.broadcast %cst_10 : f32 to vector<128x128xf32>
      %c0_11 = arith.constant 0 : index
      %c0_12 = arith.constant 0 : index
      %13 = vector.load %arg8[%c0_11, %c0_12] : memref<128x128xf32, #tpu.memory_space<vmem>>, vector<128x128xf32>
      tpu.vector_store %arg8[%c0_11, %c0_12], %12 {strides = array<i32>} : memref<128x128xf32, #tpu.memory_space<vmem>>, vector<128x128xf32>,
    } else {
    }
    %c0 = arith.constant 0 : index
    %c0_1 = arith.constant 0 : index
    %3 = vector.load %arg8[%c0, %c0_1] : memref<128x128xf32, #tpu.memory_space<vmem>>, vector<128x128xf32>
    %c0_2 = arith.constant 0 : index
    %c0_3 = arith.constant 0 : index
    %4 = vector.load %arg2[%c0_2, %c0_3] : memref<128x128xf32, #tpu.memory_space<vmem>>, vector<128x128xf32>
    %c0_4 = arith.constant 0 : index
    %c0_5 = arith.constant 0 : index
    %5 = vector.load %arg3[%c0_4, %c0_5] : memref<128x128xf32, #tpu.memory_space<vmem>>, vector<128x128xf32>
    %cst = arith.constant dense<0.000000e+00> : vector<128x128xf32>
    %6 = tpu.matmul %4, %5, %cst {dimension_numbers = #tpu.dot_dimension_numbers<[1], [0], [0], [1], [0, 0, 1, 1], [], []>} : vector<128x128xf32>, vector<128x128xf32>, vector<128x128xf32> -> vector<128x128xf32>
    %7 = arith.addf %3, %6 : vector<128x128xf32>
    %c0_6 = arith.constant 0 : index
    %c0_7 = arith.constant 0 : index
    %8 = vector.load %arg8[%c0_6, %c0_7] : memref<128x128xf32, #tpu.memory_space<vmem>>, vector<128x128xf32>
    tpu.vector_store %arg8[%c0_6, %c0_7], %7 {strides = array<i32>} : memref<128x128xf32, #tpu.memory_space<vmem>>, vector<128x128xf32>,
    %c0_i32_8 = arith.constant 0 : i32
    %9 = arith.cmpi eq, %arg1, %c0_i32_8 : i32
    %10 = arith.extui %9 : i1 to i32
    %c0_i32_9 = arith.constant 0 : i32
    %11 = arith.cmpi ne, %10, %c0_i32_9 : i32
    scf.if %11 {
      %c0_10 = arith.constant 0 : index
      %c0_11 = arith.constant 0 : index
      %12 = vector.load %arg8[%c0_10, %c0_11] : memref<128x128xf32, #tpu.memory_space<vmem>>, vector<128x128xf32>
      %c0_12 = arith.constant 0 : index
      %c0_13 = arith.constant 0 : index
      %13 = vector.load %arg4[%c0_12, %c0_13] : memref<1x128xf32, #tpu.memory_space<vmem>>, vector<1x128xf32>
      %14 = vector.broadcast %13 : vector<1x128xf32> to vector<128x128xf32>
      %15 = arith.addf %12, %14 : vector<128x128xf32>
      %cst_14 = arith.constant dense<0.000000e+00> : vector<128xf32>
      %16 = vector.multi_reduction <add>, %15, %cst_14 [1] : vector<128x128xf32> to vector<128xf32>
      %17 = vector.shape_cast %16 : vector<128xf32> to vector<128x1xf32>
      %cst_15 = arith.constant 1.280000e+02 : f32
      %18 = vector.broadcast %cst_15 : f32 to vector<128x1xf32>
      %19 = arith.divf %17, %18 : vector<128x1xf32>
      %20 = vector.broadcast %19 : vector<128x1xf32> to vector<128x128xf32>
      %21 = arith.subf %15, %20 : vector<128x128xf32>
      %22 = arith.mulf %21, %21 : vector<128x128xf32>
      %cst_16 = arith.constant dense<0.000000e+00> : vector<128xf32>
      %23 = vector.multi_reduction <add>, %22, %cst_16 [1] : vector<128x128xf32> to vector<128xf32>
      %24 = vector.shape_cast %23 : vector<128xf32> to vector<128x1xf32>
      %cst_17 = arith.constant 1.280000e+02 : f32
      %25 = vector.broadcast %cst_17 : f32 to vector<128x1xf32>
      %26 = arith.divf %24, %25 : vector<128x1xf32>
      %cst_18 = arith.constant 9.99999974E-6 : f32
      %27 = vector.broadcast %cst_18 : f32 to vector<128x1xf32>
      %28 = arith.addf %26, %27 : vector<128x1xf32>
      %29 = math.rsqrt %28 : vector<128x1xf32>
      %30 = vector.broadcast %29 : vector<128x1xf32> to vector<128x128xf32>
      %31 = arith.mulf %21, %30 : vector<128x128xf32>
      %c0_19 = arith.constant 0 : index
      %c0_20 = arith.constant 0 : index
      %32 = vector.load %arg5[%c0_19, %c0_20] : memref<1x128xf32, #tpu.memory_space<vmem>>, vector<1x128xf32>
      %33 = vector.broadcast %32 : vector<1x128xf32> to vector<128x128xf32>
      %34 = arith.mulf %31, %33 : vector<128x128xf32>
      %c0_21 = arith.constant 0 : index
      %c0_22 = arith.constant 0 : index
      %35 = vector.load %arg6[%c0_21, %c0_22] : memref<1x128xf32, #tpu.memory_space<vmem>>, vector<1x128xf32>
      %36 = vector.broadcast %35 : vector<1x128xf32> to vector<128x128xf32>
      %37 = arith.addf %34, %36 : vector<128x128xf32>
      %c0_23 = arith.constant 0 : index
      %c0_24 = arith.constant 0 : index
      %38 = vector.load %arg7[%c0_23, %c0_24] : memref<128x128xf32, #tpu.memory_space<vmem>>, vector<128x128xf32>
      tpu.vector_store %arg7[%c0_23, %c0_24], %37 {strides = array<i32>} : memref<128x128xf32, #tpu.memory_space<vmem>>, vector<128x128xf32>,
    } else {
    }
    return
  }
  func.func @transform_0(%arg0: i32, %arg1: i32) -> (i32, i32) {
    %c0_i32 = arith.constant 0 : i32
    return %arg0, %arg1 : i32, i32
  }
  func.func @transform_1(%arg0: i32, %arg1: i32) -> (i32, i32) {
    %c0_i32 = arith.constant 0 : i32
    %c0_i32_0 = arith.constant 0 : i32
    return %arg1, %c0_i32 : i32, i32
  }
  func.func @transform_2(%arg0: i32, %arg1: i32) -> (i32, i32) {
    %c0_i32 = arith.constant 0 : i32
    %c0_i32_0 = arith.constant 0 : i32
    %c0_i32_1 = arith.constant 0 : i32
    return %c0_i32, %c0_i32_0 : i32, i32
  }
  func.func @transform_3(%arg0: i32, %arg1: i32) -> (i32, i32) {
    %c0_i32 = arith.constant 0 : i32
    %c0_i32_0 = arith.constant 0 : i32
    %c0_i32_1 = arith.constant 0 : i32
    return %c0_i32, %c0_i32_0 : i32, i32
  }
  func.func @transform_4(%arg0: i32, %arg1: i32) -> (i32, i32) {
    %c0_i32 = arith.constant 0 : i32
    %c0_i32_0 = arith.constant 0 : i32
    %c0_i32_1 = arith.constant 0 : i32
    return %c0_i32, %c0_i32_0 : i32, i32
  }
  func.func @transform_5(%arg0: i32, %arg1: i32) -> (i32, i32) {
    %c0_i32 = arith.constant 0 : i32
    %c0_i32_0 = arith.constant 0 : i32
    return %arg0, %c0_i32 : i32, i32
  }
}

</mosaic_0001>

<llo_original>
// kernel: tpu_custom_call.1
$region0: #{tpu_custom_call.1}
  #allocation0 [shape = 'u32[]', space=smem, size = 0x4, offset = 0x4, fixed_abs, tag = 'smem constant byte address 0x4 - core index']
  #allocation1 [shape = 'u32[144,128]{1,0:T(1,128)}', space=vmem, size = 0x12000, scoped, tag = 'internal scratch']
  #allocation2 [shape = 'f32[128,128]{1,0:T(8,128)}', space=vmem, size = 0x10000, scoped, tag = 'scratch operand']
  %s0 = inlined_call_operand.hbm [shape: f32[128,128], index: 0, kind: input, shape index: {}]
  %s1 = inlined_call_operand.hbm [shape: f32[128,128], index: 1, kind: input, shape index: {}]
  %s2 = inlined_call_operand.vmem [shape: f32[1,128], index: 2, kind: input, shape index: {}]
  %s3 = inlined_call_operand.vmem [shape: f32[1,128], index: 3, kind: input, shape index: {}]
  %s4 = inlined_call_operand.vmem [shape: f32[1,128], index: 4, kind: input, shape index: {}]
  %s5 = inlined_call_operand.hbm [shape: f32[128,128], index: 5, kind: output, shape index: {}]
  %s6 = sld [smem:[#allocation0]]
  $region46: #{tpu_custom_call.1} parent=0
    _
  %s8 = ssub.s32 1, %s6
  %s9 = scalar_select 0, %s8, %s6
  $region1: #{tpu_custom_call.1} parent=0
    #allocation3 [shape = 'u8[65536]{0}', space=vmem, size = 0x10000, scoped, tag = 'input window, operand 0, single buffered']
    #allocation4 [shape = 's32[1]{0}', space=sflag, size = 0x4, scoped, tag = 'scoped memory for tpu_custom_call.1']
    #allocation5 [shape = 's32[1]{0}', space=sflag, size = 0x4, scoped, tag = 'scoped memory for tpu_custom_call.1']
    #allocation6 [shape = 'u8[65536]{0}', space=vmem, size = 0x10000, scoped, tag = 'input window, operand 1, single buffered']
    #allocation7 [shape = 's32[1]{0}', space=sflag, size = 0x4, scoped, tag = 'scoped memory for tpu_custom_call.1']
    #allocation8 [shape = 'u8[65536]{0}', space=vmem, size = 0x10000, scoped, tag = 'output window, operand 0, single buffered']
    %10 = vsyncpa [#allocation4], 0
    %11 = vsyncpa [#allocation7], 0
    %12 = vsyncpa [#allocation5], 0
    // Predicated region
    $region2: #{tpu_custom_call.1} parent=1 // pred_check
      _
    $region3: #{tpu_custom_call.1} parent=1 // pred_check_branch
      %14 = sbr.rel (0) target = $region5
    $region4: #{tpu_custom_call.1} parent=1 // pred_region
      %s16 = ssub.s32 2048, 2048
      %17 = vsyncadd [#allocation4], %s16
      %s18 = sshll.u32 [#allocation3], 4
      %s19 = int_to_ptr.vmem [resolvable:$true] %s18
      %24 = dma.hbm_to_vmem [thread:$0]  %s0, 2048, %s19, [#allocation4], 128, 128, 8
    $region5: #{tpu_custom_call.1} parent=1 // pred_fallthru
      _
    // Predicated region
    $region6: #{tpu_custom_call.1} parent=1 // pred_check
      _
    $region7: #{tpu_custom_call.1} parent=1 // pred_check_branch
      %26 = sbr.rel (0) target = $region9
    $region8: #{tpu_custom_call.1} parent=1 // pred_region
      %s28 = ssub.s32 2048, 2048
      %29 = vsyncadd [#allocation7], %s28
      %s30 = sshll.u32 [#allocation6], 4
      %s31 = int_to_ptr.vmem [resolvable:$true] %s30
      %36 = dma.hbm_to_vmem [thread:$0]  %s1, 2048, %s31, [#allocation7], 128, 128, 8
    $region9: #{tpu_custom_call.1} parent=1 // pred_fallthru
      _
    // Predicated region
    $region10: #{tpu_custom_call.1} parent=1 // pred_check
      _
    $region11: #{tpu_custom_call.1} parent=1 // pred_check_branch
      %38 = sbr.rel (0) target = $region13
    $region12: #{tpu_custom_call.1} parent=1 // pred_region
      _
    $region13: #{tpu_custom_call.1} parent=1 // pred_fallthru
      _
    // Predicated region
    $region14: #{tpu_custom_call.1} parent=1 // pred_check
      _
    $region15: #{tpu_custom_call.1} parent=1 // pred_check_branch
      %40 = sbr.rel (0) target = $region17
    $region16: #{tpu_custom_call.1} parent=1 // pred_region
      _
    $region17: #{tpu_custom_call.1} parent=1 // pred_fallthru
      _
    // Predicated region
    $region18: #{tpu_custom_call.1} parent=1 // pred_check
      _
    $region19: #{tpu_custom_call.1} parent=1 // pred_check_branch
      %42 = sbr.rel (0) target = $region21
    $region20: #{tpu_custom_call.1} parent=1 // pred_region
      _
    $region21: #{tpu_custom_call.1} parent=1 // pred_fallthru
      _
    // Predicated region
    $region22: #{tpu_custom_call.1} parent=1 // pred_check
      _
    $region23: #{tpu_custom_call.1} parent=1 // pred_check_branch
      %44 = sbr.rel (0) target = $region25
    $region24: #{tpu_custom_call.1} parent=1 // pred_region
      %45 = dma.done [#allocation4], 2048
    $region25: #{tpu_custom_call.1} parent=1 // pred_fallthru
      _
    // Predicated region
    $region26: #{tpu_custom_call.1} parent=1 // pred_check
      _
    $region27: #{tpu_custom_call.1} parent=1 // pred_check_branch
      %47 = sbr.rel (0) target = $region29
    $region28: #{tpu_custom_call.1} parent=1 // pred_region
      %48 = dma.done [#allocation7], 2048
    $region29: #{tpu_custom_call.1} parent=1 // pred_fallthru
      _
    %p49 = scmp.eq.s32.totalorder 0, 0
    // Predicated region
    $region30: #{tpu_custom_call.1} parent=1 // pred_check
      %p50 = pneg %p49
    $region31: #{tpu_custom_call.1} parent=1 // pred_check_branch
      %52 = sbr.rel (%p50) target = $region33
    $region32: #{tpu_custom_call.1} parent=1 // pred_region
      %53 = vst [vmem:[#allocation2] sm:$0xff] 0.0
      %54 = vst [vmem:[#allocation2 + $0x8] sm:$0xff] 0.0
      %55 = vst [vmem:[#allocation2 + $0x10] sm:$0xff] 0.0
      %56 = vst [vmem:[#allocation2 + $0x18] sm:$0xff] 0.0
      %57 = vst [vmem:[#allocation2 + $0x20] sm:$0xff] 0.0
      %58 = vst [vmem:[#allocation2 + $0x28] sm:$0xff] 0.0
      %59 = vst [vmem:[#allocation2 + $0x30] sm:$0xff] 0.0
      %60 = vst [vmem:[#allocation2 + $0x38] sm:$0xff] 0.0
      %61 = vst [vmem:[#allocation2 + $0x40] sm:$0xff] 0.0
      %62 = vst [vmem:[#allocation2 + $0x48] sm:$0xff] 0.0
      %63 = vst [vmem:[#allocation2 + $0x50] sm:$0xff] 0.0
      %64 = vst [vmem:[#allocation2 + $0x58] sm:$0xff] 0.0
      %65 = vst [vmem:[#allocation2 + $0x60] sm:$0xff] 0.0
      %66 = vst [vmem:[#allocation2 + $0x68] sm:$0xff] 0.0
      %67 = vst [vmem:[#allocation2 + $0x70] sm:$0xff] 0.0
      %68 = vst [vmem:[#allocation2 + $0x78] sm:$0xff] 0.0
    $region33: #{tpu_custom_call.1} parent=1 // pred_fallthru
      _
    %v69 = vld [vmem:[#allocation2] sm:$0xff]
    %v70 = vld [vmem:[#allocation2 + $0x8] sm:$0xff]
    %v71 = vld [vmem:[#allocation2 + $0x10] sm:$0xff]
    %v72 = vld [vmem:[#allocation2 + $0x18] sm:$0xff]
    %v73 = vld [vmem:[#allocation2 + $0x20] sm:$0xff]
    %v74 = vld [vmem:[#allocation2 + $0x28] sm:$0xff]
    %v75 = vld [vmem:[#allocation2 + $0x30] sm:$0xff]
    %v76 = vld [vmem:[#allocation2 + $0x38] sm:$0xff]
    %v77 = vld [vmem:[#allocation2 + $0x40] sm:$0xff]
    %v78 = vld [vmem:[#allocation2 + $0x48] sm:$0xff]
    %v79 = vld [vmem:[#allocation2 + $0x50] sm:$0xff]
    %v80 = vld [vmem:[#allocation2 + $0x58] sm:$0xff]
    %v81 = vld [vmem:[#allocation2 + $0x60] sm:$0xff]
    %v82 = vld [vmem:[#allocation2 + $0x68] sm:$0xff]
    %v83 = vld [vmem:[#allocation2 + $0x70] sm:$0xff]
    %v84 = vld [vmem:[#allocation2 + $0x78] sm:$0xff]
    %v85 = vld [vmem:[#allocation3] sm:$0xff]
    %v86 = vld [vmem:[#allocation3 + $0x8] sm:$0xff]
    %v87 = vld [vmem:[#allocation3 + $0x10] sm:$0xff]
    %v88 = vld [vmem:[#allocation3 + $0x18] sm:$0xff]
    %v89 = vld [vmem:[#allocation3 + $0x20] sm:$0xff]
    %v90 = vld [vmem:[#allocation3 + $0x28] sm:$0xff]
    %v91 = vld [vmem:[#allocation3 + $0x30] sm:$0xff]
    %v92 = vld [vmem:[#allocation3 + $0x38] sm:$0xff]
    %v93 = vld [vmem:[#allocation3 + $0x40] sm:$0xff]
    %v94 = vld [vmem:[#allocation3 + $0x48] sm:$0xff]
    %v95 = vld [vmem:[#allocation3 + $0x50] sm:$0xff]
    %v96 = vld [vmem:[#allocation3 + $0x58] sm:$0xff]
    %v97 = vld [vmem:[#allocation3 + $0x60] sm:$0xff]
    %v98 = vld [vmem:[#allocation3 + $0x68] sm:$0xff]
    %v99 = vld [vmem:[#allocation3 + $0x70] sm:$0xff]
    %v100 = vld [vmem:[#allocation3 + $0x78] sm:$0xff]
    %v101 = vld [vmem:[#allocation6] sm:$0xff]
    %v102 = vld [vmem:[#allocation6 + $0x8] sm:$0xff]
    %v103 = vld [vmem:[#allocation6 + $0x10] sm:$0xff]
    %v104 = vld [vmem:[#allocation6 + $0x18] sm:$0xff]
    %v105 = vld [vmem:[#allocation6 + $0x20] sm:$0xff]
    %v106 = vld [vmem:[#allocation6 + $0x28] sm:$0xff]
    %v107 = vld [vmem:[#allocation6 + $0x30] sm:$0xff]
    %v108 = vld [vmem:[#allocation6 + $0x38] sm:$0xff]
    %v109 = vld [vmem:[#allocation6 + $0x40] sm:$0xff]
    %v110 = vld [vmem:[#allocation6 + $0x48] sm:$0xff]
    %v111 = vld [vmem:[#allocation6 + $0x50] sm:$0xff]
    %v112 = vld [vmem:[#allocation6 + $0x58] sm:$0xff]
    %v113 = vld [vmem:[#allocation6 + $0x60] sm:$0xff]
    %v114 = vld [vmem:[#allocation6 + $0x68] sm:$0xff]
    %v115 = vld [vmem:[#allocation6 + $0x70] sm:$0xff]
    %v116 = vld [vmem:[#allocation6 + $0x78] sm:$0xff]
    %117 = vmatprep.subr.mxu0 0.0
    %118 = vmatpush1.msra.mxu0 %v101
    %119 = vmatprep.subr.mxu0 0.0
    %120 = vmatpush1.msra.mxu0 %v102
    %121 = vmatprep.subr.mxu0 0.0
    %122 = vmatpush1.msra.mxu0 %v103
    %123 = vmatprep.subr.mxu0 0.0
    %124 = vmatpush1.msra.mxu0 %v104
    %125 = vmatprep.subr.mxu0 0.0
    %126 = vmatpush1.msra.mxu0 %v105
    %127 = vmatprep.subr.mxu0 0.0
    %128 = vmatpush1.msra.mxu0 %v106
    %129 = vmatprep.subr.mxu0 0.0
    %130 = vmatpush1.msra.mxu0 %v107
    %131 = vmatprep.subr.mxu0 0.0
    %132 = vmatpush1.msra.mxu0 %v108
    %133 = vmatprep.subr.mxu0 0.0
    %134 = vmatpush1.msra.mxu0 %v109
    %135 = vmatprep.subr.mxu0 0.0
    %136 = vmatpush1.msra.mxu0 %v110
    %137 = vmatprep.subr.mxu0 0.0
    %138 = vmatpush1.msra.mxu0 %v111
    %139 = vmatprep.subr.mxu0 0.0
    %140 = vmatpush1.msra.mxu0 %v112
    %141 = vmatprep.subr.mxu0 0.0
    %142 = vmatpush1.msra.mxu0 %v113
    %143 = vmatprep.subr.mxu0 0.0
    %144 = vmatpush1.msra.mxu0 %v114
    %145 = vmatprep.subr.mxu0 0.0
    %146 = vmatpush1.msra.mxu0 %v115
    %147 = vmatprep.subr.mxu0 0.0
    %148 = vmatpush1.msra.mxu0 %v116
    %149 = vmatprep.subr.mxu0 0.0
    %150 = vmatpush1.msra.mxu0 0.0
    %151 = vmatprep.subr.mxu0 0.0
    %152 = vmatpush1.msra.mxu0 0.0
    %153 = vmatprep.subr.mxu0 0.0
    %154 = vmatpush1.msra.mxu0 0.0
    %155 = vmatprep.subr.mxu0 0.0
    %156 = vmatpush1.msra.mxu0 0.0
    %157 = vmatprep.subr.mxu0 0.0
    %158 = vmatpush1.msra.mxu0 0.0
    %159 = vmatprep.subr.mxu0 0.0
    %160 = vmatpush1.msra.mxu0 0.0
    %161 = vmatprep.subr.mxu0 0.0
    %162 = vmatpush1.msra.mxu0 0.0
    %163 = vmatprep.subr.mxu0 0.0
    %164 = vmatpush1.msra.mxu0 0.0
    %165 = vmatprep.subr.mxu0 0.0
    %166 = vmatpush1.msra.mxu0 0.0
    %167 = vmatprep.subr.mxu0 0.0
    %168 = vmatpush1.msra.mxu0 0.0
    %169 = vmatprep.subr.mxu0 0.0
    %170 = vmatpush1.msra.mxu0 0.0
    %171 = vmatprep.subr.mxu0 0.0
    %172 = vmatpush1.msra.mxu0 0.0
    %173 = vmatprep.subr.mxu0 0.0
    %174 = vmatpush1.msra.mxu0 0.0
    %175 = vmatprep.subr.mxu0 0.0
    %176 = vmatpush1.msra.mxu0 0.0
    %177 = vmatprep.subr.mxu0 0.0
    %178 = vmatpush1.msra.mxu0 0.0
    %179 = vmatprep.subr.mxu0 0.0
    %180 = vmatpush1.msra.mxu0 0.0
    %181 = vmatprep.mubr.f32.mxu0 0.0
    %182 = vmatmul.mubr.f32.gmra.mrb[0].mxu0 %v85
    %v183 = vpop.f32.mrb[0].mxu0
    %v184 = vadd.f32 0.0, %v183
    %v185 = vpop.f32.mrb[0].mxu0
    %186 = vmatprep.mubr.f32.mxu0 0.0
    %187 = vmatmul.mubr.f32.gmra.mrb[0].mxu0 %v86
    %v188 = vpop.f32.mrb[0].mxu0
    %v189 = vadd.f32 0.0, %v188
    %v190 = vpop.f32.mrb[0].mxu0
    %191 = vmatprep.mubr.f32.mxu0 0.0
    %192 = vmatmul.mubr.f32.gmra.mrb[0].mxu0 %v87
    %v193 = vpop.f32.mrb[0].mxu0
    %v194 = vadd.f32 0.0, %v193
    %v195 = vpop.f32.mrb[0].mxu0
    %196 = vmatprep.mubr.f32.mxu0 0.0
    %197 = vmatmul.mubr.f32.gmra.mrb[0].mxu0 %v88
    %v198 = vpop.f32.mrb[0].mxu0
    %v199 = vadd.f32 0.0, %v198
    %v200 = vpop.f32.mrb[0].mxu0
    %201 = vmatprep.mubr.f32.mxu0 0.0
    %202 = vmatmul.mubr.f32.gmra.mrb[0].mxu0 %v89
    %v203 = vpop.f32.mrb[0].mxu0
    %v204 = vadd.f32 0.0, %v203
    %v205 = vpop.f32.mrb[0].mxu0
    %206 = vmatprep.mubr.f32.mxu0 0.0
    %207 = vmatmul.mubr.f32.gmra.mrb[0].mxu0 %v90
    %v208 = vpop.f32.mrb[0].mxu0
    %v209 = vadd.f32 0.0, %v208
    %v210 = vpop.f32.mrb[0].mxu0
    %211 = vmatprep.mubr.f32.mxu0 0.0
    %212 = vmatmul.mubr.f32.gmra.mrb[0].mxu0 %v91
    %v213 = vpop.f32.mrb[0].mxu0
    %v214 = vadd.f32 0.0, %v213
    %v215 = vpop.f32.mrb[0].mxu0
    %216 = vmatprep.mubr.f32.mxu0 0.0
    %217 = vmatmul.mubr.f32.gmra.mrb[0].mxu0 %v92
    %v218 = vpop.f32.mrb[0].mxu0
    %v219 = vadd.f32 0.0, %v218
    %v220 = vpop.f32.mrb[0].mxu0
    %221 = vmatprep.mubr.f32.mxu0 0.0
    %222 = vmatmul.mubr.f32.gmra.mrb[0].mxu0 %v93
    %v223 = vpop.f32.mrb[0].mxu0
    %v224 = vadd.f32 0.0, %v223
    %v225 = vpop.f32.mrb[0].mxu0
    %226 = vmatprep.mubr.f32.mxu0 0.0
    %227 = vmatmul.mubr.f32.gmra.mrb[0].mxu0 %v94
    %v228 = vpop.f32.mrb[0].mxu0
    %v229 = vadd.f32 0.0, %v228
    %v230 = vpop.f32.mrb[0].mxu0
    %231 = vmatprep.mubr.f32.mxu0 0.0
    %232 = vmatmul.mubr.f32.gmra.mrb[0].mxu0 %v95
    %v233 = vpop.f32.mrb[0].mxu0
    %v234 = vadd.f32 0.0, %v233
    %v235 = vpop.f32.mrb[0].mxu0
    %236 = vmatprep.mubr.f32.mxu0 0.0
    %237 = vmatmul.mubr.f32.gmra.mrb[0].mxu0 %v96
    %v238 = vpop.f32.mrb[0].mxu0
    %v239 = vadd.f32 0.0, %v238
    %v240 = vpop.f32.mrb[0].mxu0
    %241 = vmatprep.mubr.f32.mxu0 0.0
    %242 = vmatmul.mubr.f32.gmra.mrb[0].mxu0 %v97
    %v243 = vpop.f32.mrb[0].mxu0
    %v244 = vadd.f32 0.0, %v243
    %v245 = vpop.f32.mrb[0].mxu0
    %246 = vmatprep.mubr.f32.mxu0 0.0
    %247 = vmatmul.mubr.f32.gmra.mrb[0].mxu0 %v98
    %v248 = vpop.f32.mrb[0].mxu0
    %v249 = vadd.f32 0.0, %v248
    %v250 = vpop.f32.mrb[0].mxu0
    %251 = vmatprep.mubr.f32.mxu0 0.0
    %252 = vmatmul.mubr.f32.gmra.mrb[0].mxu0 %v99
    %v253 = vpop.f32.mrb[0].mxu0
    %v254 = vadd.f32 0.0, %v253
    %v255 = vpop.f32.mrb[0].mxu0
    %256 = vmatprep.mubr.f32.mxu0 0.0
    %257 = vmatmul.mubr.f32.gmra.mrb[0].mxu0 %v100
    %v258 = vpop.f32.mrb[0].mxu0
    %v259 = vadd.f32 0.0, %v258
    %v260 = vpop.f32.mrb[0].mxu0
    %261 = vdwg.mxu0
    %v262 = vadd.f32 %v69, %v184
    %v263 = vadd.f32 %v70, %v189
    %v264 = vadd.f32 %v71, %v194
    %v265 = vadd.f32 %v72, %v199
    %v266 = vadd.f32 %v73, %v204
    %v267 = vadd.f32 %v74, %v209
    %v268 = vadd.f32 %v75, %v214
    %v269 = vadd.f32 %v76, %v219
    %v270 = vadd.f32 %v77, %v224
    %v271 = vadd.f32 %v78, %v229
    %v272 = vadd.f32 %v79, %v234
    %v273 = vadd.f32 %v80, %v239
    %v274 = vadd.f32 %v81, %v244
    %v275 = vadd.f32 %v82, %v249
    %v276 = vadd.f32 %v83, %v254
    %v277 = vadd.f32 %v84, %v259
    %278 = vst [vmem:[#allocation2] sm:$0xff] %v262
    %279 = vst [vmem:[#allocation2 + $0x8] sm:$0xff] %v263
    %280 = vst [vmem:[#allocation2 + $0x10] sm:$0xff] %v264
    %281 = vst [vmem:[#allocation2 + $0x18] sm:$0xff] %v265
    %282 = vst [vmem:[#allocation2 + $0x20] sm:$0xff] %v266
    %283 = vst [vmem:[#allocation2 + $0x28] sm:$0xff] %v267
    %284 = vst [vmem:[#allocation2 + $0x30] sm:$0xff] %v268
    %285 = vst [vmem:[#allocation2 + $0x38] sm:$0xff] %v269
    %286 = vst [vmem:[#allocation2 + $0x40] sm:$0xff] %v270
    %287 = vst [vmem:[#allocation2 + $0x48] sm:$0xff] %v271
    %288 = vst [vmem:[#allocation2 + $0x50] sm:$0xff] %v272
    %289 = vst [vmem:[#allocation2 + $0x58] sm:$0xff] %v273
    %290 = vst [vmem:[#allocation2 + $0x60] sm:$0xff] %v274
    %291 = vst [vmem:[#allocation2 + $0x68] sm:$0xff] %v275
    %292 = vst [vmem:[#allocation2 + $0x70] sm:$0xff] %v276
    %293 = vst [vmem:[#allocation2 + $0x78] sm:$0xff] %v277
    // Predicated region
    $region34: #{tpu_custom_call.1} parent=1 // pred_check
      %p294 = pneg %p49
    $region35: #{tpu_custom_call.1} parent=1 // pred_check_branch
      %296 = sbr.rel (%p294) target = $region37
    $region36: #{tpu_custom_call.1} parent=1 // pred_region
      %v297 = vld [vmem:[#allocation2] sm:$0xff]
      %v298 = vld [vmem:[#allocation2 + $0x8] sm:$0xff]
      %v299 = vld [vmem:[#allocation2 + $0x10] sm:$0xff]
      %v300 = vld [vmem:[#allocation2 + $0x18] sm:$0xff]
      %v301 = vld [vmem:[#allocation2 + $0x20] sm:$0xff]
      %v302 = vld [vmem:[#allocation2 + $0x28] sm:$0xff]
      %v303 = vld [vmem:[#allocation2 + $0x30] sm:$0xff]
      %v304 = vld [vmem:[#allocation2 + $0x38] sm:$0xff]
      %v305 = vld [vmem:[#allocation2 + $0x40] sm:$0xff]
      %v306 = vld [vmem:[#allocation2 + $0x48] sm:$0xff]
      %v307 = vld [vmem:[#allocation2 + $0x50] sm:$0xff]
      %v308 = vld [vmem:[#allocation2 + $0x58] sm:$0xff]
      %v309 = vld [vmem:[#allocation2 + $0x60] sm:$0xff]
      %v310 = vld [vmem:[#allocation2 + $0x68] sm:$0xff]
      %v311 = vld [vmem:[#allocation2 + $0x70] sm:$0xff]
      %v312 = vld [vmem:[#allocation2 + $0x78] sm:$0xff]
      %v313 = vld [vmem:[%s2] sm:$0x1]
      %v315 = vlaneseq
      %v316 = vshrl.u32 %v315, 7
      %v317 = vsub.s32 0, %v316
      %v318 = vrot.slane %v313, %v317
      %v320 = vadd.f32 %v297, %v318
      %v321 = vadd.f32 %v298, %v318
      %v322 = vadd.f32 %v299, %v318
      %v323 = vadd.f32 %v300, %v318
      %v324 = vadd.f32 %v301, %v318
      %v325 = vadd.f32 %v302, %v318
      %v326 = vadd.f32 %v303, %v318
      %v327 = vadd.f32 %v304, %v318
      %v328 = vadd.f32 %v305, %v318
      %v329 = vadd.f32 %v306, %v318
      %v330 = vadd.f32 %v307, %v318
      %v331 = vadd.f32 %v308, %v318
      %v332 = vadd.f32 %v309, %v318
      %v333 = vadd.f32 %v310, %v318
      %v334 = vadd.f32 %v311, %v318
      %v335 = vadd.f32 %v312, %v318
      %336 = vadd.xlane.f32.xlu0 %v320
      %v337 = vpop.xlane.xlu0 %336
      %338 = vadd.xlane.f32.xlu0 %v321
      %v339 = vpop.xlane.xlu0 %338
      %340 = vadd.xlane.f32.xlu0 %v322
      %v341 = vpop.xlane.xlu0 %340
      %342 = vadd.xlane.f32.xlu0 %v323
      %v343 = vpop.xlane.xlu0 %342
      %344 = vadd.xlane.f32.xlu0 %v324
      %v345 = vpop.xlane.xlu0 %344
      %346 = vadd.xlane.f32.xlu0 %v325
      %v347 = vpop.xlane.xlu0 %346
      %348 = vadd.xlane.f32.xlu0 %v326
      %v349 = vpop.xlane.xlu0 %348
      %350 = vadd.xlane.f32.xlu0 %v327
      %v351 = vpop.xlane.xlu0 %350
      %352 = vadd.xlane.f32.xlu0 %v328
      %v353 = vpop.xlane.xlu0 %352
      %354 = vadd.xlane.f32.xlu0 %v329
      %v355 = vpop.xlane.xlu0 %354
      %356 = vadd.xlane.f32.xlu0 %v330
      %v357 = vpop.xlane.xlu0 %356
      %358 = vadd.xlane.f32.xlu0 %v331
      %v359 = vpop.xlane.xlu0 %358
      %360 = vadd.xlane.f32.xlu0 %v332
      %v361 = vpop.xlane.xlu0 %360
      %362 = vadd.xlane.f32.xlu0 %v333
      %v363 = vpop.xlane.xlu0 %362
      %364 = vadd.xlane.f32.xlu0 %v334
      %v365 = vpop.xlane.xlu0 %364
      %366 = vadd.xlane.f32.xlu0 %v335
      %v367 = vpop.xlane.xlu0 %366
      %v368 = vrcp.pop 128.0
      %v369 = vmul.f32 %v337, %v368
      %v370 = vmul.f32 %v339, %v368
      %v371 = vmul.f32 %v341, %v368
      %v372 = vmul.f32 %v343, %v368
      %v373 = vmul.f32 %v345, %v368
      %v374 = vmul.f32 %v347, %v368
      %v375 = vmul.f32 %v349, %v368
      %v376 = vmul.f32 %v351, %v368
      %v377 = vmul.f32 %v353, %v368
      %v378 = vmul.f32 %v355, %v368
      %v379 = vmul.f32 %v357, %v368
      %v380 = vmul.f32 %v359, %v368
      %v381 = vmul.f32 %v361, %v368
      %v382 = vmul.f32 %v363, %v368
      %v383 = vmul.f32 %v365, %v368
      %v384 = vmul.f32 %v367, %v368
      %v385 = vsub.f32 %v320, %v369
      %v386 = vsub.f32 %v321, %v370
      %v387 = vsub.f32 %v322, %v371
      %v388 = vsub.f32 %v323, %v372
      %v389 = vsub.f32 %v324, %v373
      %v390 = vsub.f32 %v325, %v374
      %v391 = vsub.f32 %v326, %v375
      %v392 = vsub.f32 %v327, %v376
      %v393 = vsub.f32 %v328, %v377
      %v394 = vsub.f32 %v329, %v378
      %v395 = vsub.f32 %v330, %v379
      %v396 = vsub.f32 %v331, %v380
      %v397 = vsub.f32 %v332, %v381
      %v398 = vsub.f32 %v333, %v382
      %v399 = vsub.f32 %v334, %v383
      %v400 = vsub.f32 %v335, %v384
      %v401 = vmul.f32 %v385, %v385
      %v402 = vmul.f32 %v386, %v386
      %v403 = vmul.f32 %v387, %v387
      %v404 = vmul.f32 %v388, %v388
      %v405 = vmul.f32 %v389, %v389
      %v406 = vmul.f32 %v390, %v390
      %v407 = vmul.f32 %v391, %v391
      %v408 = vmul.f32 %v392, %v392
      %v409 = vmul.f32 %v393, %v393
      %v410 = vmul.f32 %v394, %v394
      %v411 = vmul.f32 %v395, %v395
      %v412 = vmul.f32 %v396, %v396
      %v413 = vmul.f32 %v397, %v397
      %v414 = vmul.f32 %v398, %v398
      %v415 = vmul.f32 %v399, %v399
      %v416 = vmul.f32 %v400, %v400
      %417 = vadd.xlane.f32.xlu0 %v401
      %v418 = vpop.xlane.xlu0 %417
      %419 = vadd.xlane.f32.xlu0 %v402
      %v420 = vpop.xlane.xlu0 %419
      %421 = vadd.xlane.f32.xlu0 %v403
      %v422 = vpop.xlane.xlu0 %421
      %423 = vadd.xlane.f32.xlu0 %v404
      %v424 = vpop.xlane.xlu0 %423
      %425 = vadd.xlane.f32.xlu0 %v405
      %v426 = vpop.xlane.xlu0 %425
      %427 = vadd.xlane.f32.xlu0 %v406
      %v428 = vpop.xlane.xlu0 %427
      %429 = vadd.xlane.f32.xlu0 %v407
      %v430 = vpop.xlane.xlu0 %429
      %431 = vadd.xlane.f32.xlu0 %v408
      %v432 = vpop.xlane.xlu0 %431
      %433 = vadd.xlane.f32.xlu0 %v409
      %v434 = vpop.xlane.xlu0 %433
      %435 = vadd.xlane.f32.xlu0 %v410
      %v436 = vpop.xlane.xlu0 %435
      %437 = vadd.xlane.f32.xlu0 %v411
      %v438 = vpop.xlane.xlu0 %437
      %439 = vadd.xlane.f32.xlu0 %v412
      %v440 = vpop.xlane.xlu0 %439
      %441 = vadd.xlane.f32.xlu0 %v413
      %v442 = vpop.xlane.xlu0 %441
      %443 = vadd.xlane.f32.xlu0 %v414
      %v444 = vpop.xlane.xlu0 %443
      %445 = vadd.xlane.f32.xlu0 %v415
      %v446 = vpop.xlane.xlu0 %445
      %447 = vadd.xlane.f32.xlu0 %v416
      %v448 = vpop.xlane.xlu0 %447
      %v449 = vmul.f32 %v418, %v368
      %v450 = vmul.f32 %v420, %v368
      %v451 = vmul.f32 %v422, %v368
      %v452 = vmul.f32 %v424, %v368
      %v453 = vmul.f32 %v426, %v368
      %v454 = vmul.f32 %v428, %v368
      %v455 = vmul.f32 %v430, %v368
      %v456 = vmul.f32 %v432, %v368
      %v457 = vmul.f32 %v434, %v368
      %v458 = vmul.f32 %v436, %v368
      %v459 = vmul.f32 %v438, %v368
      %v460 = vmul.f32 %v440, %v368
      %v461 = vmul.f32 %v442, %v368
      %v462 = vmul.f32 %v444, %v368
      %v463 = vmul.f32 %v446, %v368
      %v464 = vmul.f32 %v448, %v368
      %v465 = vadd.f32 %v449, 1e-05
      %v466 = vadd.f32 %v450, 1e-05
      %v467 = vadd.f32 %v451, 1e-05
      %v468 = vadd.f32 %v452, 1e-05
      %v469 = vadd.f32 %v453, 1e-05
      %v470 = vadd.f32 %v454, 1e-05
      %v471 = vadd.f32 %v455, 1e-05
      %v472 = vadd.f32 %v456, 1e-05
      %v473 = vadd.f32 %v457, 1e-05
      %v474 = vadd.f32 %v458, 1e-05
      %v475 = vadd.f32 %v459, 1e-05
      %v476 = vadd.f32 %v460, 1e-05
      %v477 = vadd.f32 %v461, 1e-05
      %v478 = vadd.f32 %v462, 1e-05
      %v479 = vadd.f32 %v463, 1e-05
      %v480 = vadd.f32 %v464, 1e-05
      %v481 = vrsqrt.pop %v465
      %v482 = vrsqrt.pop %v466
      %v483 = vrsqrt.pop %v467
      %v484 = vrsqrt.pop %v468
      %v485 = vrsqrt.pop %v469
      %v486 = vrsqrt.pop %v470
      %v487 = vrsqrt.pop %v471
      %v488 = vrsqrt.pop %v472
      %v489 = vrsqrt.pop %v473
      %v490 = vrsqrt.pop %v474
      %v491 = vrsqrt.pop %v475
      %v492 = vrsqrt.pop %v476
      %v493 = vrsqrt.pop %v477
      %v494 = vrsqrt.pop %v478
      %v495 = vrsqrt.pop %v479
      %v496 = vrsqrt.pop %v480
      %v497 = vmul.f32 %v385, %v481
      %v498 = vmul.f32 %v386, %v482
      %v499 = vmul.f32 %v387, %v483
      %v500 = vmul.f32 %v388, %v484
      %v501 = vmul.f32 %v389, %v485
      %v502 = vmul.f32 %v390, %v486
      %v503 = vmul.f32 %v391, %v487
      %v504 = vmul.f32 %v392, %v488
      %v505 = vmul.f32 %v393, %v489
      %v506 = vmul.f32 %v394, %v490
      %v507 = vmul.f32 %v395, %v491
      %v508 = vmul.f32 %v396, %v492
      %v509 = vmul.f32 %v397, %v493
      %v510 = vmul.f32 %v398, %v494
      %v511 = vmul.f32 %v399, %v495
      %v512 = vmul.f32 %v400, %v496
      %v513 = vld [vmem:[%s3] sm:$0x1]
      %v515 = vlaneseq
      %v516 = vshrl.u32 %v515, 7
      %v517 = vsub.s32 0, %v516
      %v518 = vrot.slane %v513, %v517
      %v520 = vmul.f32 %v497, %v518
      %v521 = vmul.f32 %v498, %v518
      %v522 = vmul.f32 %v499, %v518
      %v523 = vmul.f32 %v500, %v518
      %v524 = vmul.f32 %v501, %v518
      %v525 = vmul.f32 %v502, %v518
      %v526 = vmul.f32 %v503, %v518
      %v527 = vmul.f32 %v504, %v518
      %v528 = vmul.f32 %v505, %v518
      %v529 = vmul.f32 %v506, %v518
      %v530 = vmul.f32 %v507, %v518
      %v531 = vmul.f32 %v508, %v518
      %v532 = vmul.f32 %v509, %v518
      %v533 = vmul.f32 %v510, %v518
      %v534 = vmul.f32 %v511, %v518
      %v535 = vmul.f32 %v512, %v518
      %v536 = vld [vmem:[%s4] sm:$0x1]
      %v538 = vlaneseq
      %v539 = vshrl.u32 %v538, 7
      %v540 = vsub.s32 0, %v539
      %v541 = vrot.slane %v536, %v540
      %v543 = vadd.f32 %v520, %v541
      %v544 = vadd.f32 %v521, %v541
      %v545 = vadd.f32 %v522, %v541
      %v546 = vadd.f32 %v523, %v541
      %v547 = vadd.f32 %v524, %v541
      %v548 = vadd.f32 %v525, %v541
      %v549 = vadd.f32 %v526, %v541
      %v550 = vadd.f32 %v527, %v541
      %v551 = vadd.f32 %v528, %v541
      %v552 = vadd.f32 %v529, %v541
      %v553 = vadd.f32 %v530, %v541
      %v554 = vadd.f32 %v531, %v541
      %v555 = vadd.f32 %v532, %v541
      %v556 = vadd.f32 %v533, %v541
      %v557 = vadd.f32 %v534, %v541
      %v558 = vadd.f32 %v535, %v541
      %559 = vst [vmem:[#allocation8] sm:$0xff] %v543
      %560 = vst [vmem:[#allocation8 + $0x8] sm:$0xff] %v544
      %561 = vst [vmem:[#allocation8 + $0x10] sm:$0xff] %v545
      %562 = vst [vmem:[#allocation8 + $0x18] sm:$0xff] %v546
      %563 = vst [vmem:[#allocation8 + $0x20] sm:$0xff] %v547
      %564 = vst [vmem:[#allocation8 + $0x28] sm:$0xff] %v548
      %565 = vst [vmem:[#allocation8 + $0x30] sm:$0xff] %v549
      %566 = vst [vmem:[#allocation8 + $0x38] sm:$0xff] %v550
      %567 = vst [vmem:[#allocation8 + $0x40] sm:$0xff] %v551
      %568 = vst [vmem:[#allocation8 + $0x48] sm:$0xff] %v552
      %569 = vst [vmem:[#allocation8 + $0x50] sm:$0xff] %v553
      %570 = vst [vmem:[#allocation8 + $0x58] sm:$0xff] %v554
      %571 = vst [vmem:[#allocation8 + $0x60] sm:$0xff] %v555
      %572 = vst [vmem:[#allocation8 + $0x68] sm:$0xff] %v556
      %573 = vst [vmem:[#allocation8 + $0x70] sm:$0xff] %v557
      %574 = vst [vmem:[#allocation8 + $0x78] sm:$0xff] %v558
    $region37: #{tpu_custom_call.1} parent=1 // pred_fallthru
      _
    // Predicated region
    $region38: #{tpu_custom_call.1} parent=1 // pred_check
      _
    $region39: #{tpu_custom_call.1} parent=1 // pred_check_branch
      %576 = sbr.rel (0) target = $region41
    $region40: #{tpu_custom_call.1} parent=1 // pred_region
      %s578 = ssub.s32 2048, 2048
      %579 = vsyncadd [#allocation5], %s578
      %s580 = sshll.u32 [#allocation8], 4
      %s581 = int_to_ptr.vmem [resolvable:$true] %s580
      %586 = dma.vmem_to_hbm [thread:$0]  %s581, 2048, %s5, [#allocation5], 128, 128, 8
    $region41: #{tpu_custom_call.1} parent=1 // pred_fallthru
      _
    // Predicated region
    $region42: #{tpu_custom_call.1} parent=1 // pred_check
      _
    $region43: #{tpu_custom_call.1} parent=1 // pred_check_branch
      %588 = sbr.rel (0) target = $region45
    $region44: #{tpu_custom_call.1} parent=1 // pred_region
      %589 = dma.done [#allocation5], 2048
    $region45: #{tpu_custom_call.1} parent=1 // pred_fallthru
      _
    %590 = vsyncpa [#allocation4], 1
    %591 = vsyncpa [#allocation7], 1
    %592 = vsyncpa [#allocation5], 1

</llo_original>
